<compile_context>
chip_gen: v5e
topology: v5e:2x2
jax: 0.10.0
libtpu: 0.0.40
codegen_flags: <defaults>
</compile_context>

<pallas_src>
import functools

import jax
import jax.numpy as jnp
from jax.experimental import pallas as pl
from jax.experimental.pallas import tpu as pltpu


def _round_up(x: int, m: int) -> int:
    return ((x + m - 1) // m) * m


def _cdiv(a: int, b: int) -> int:
    return -(-a // b)


def _gate_kernel(x_ref, wgt_ref, w1_ref, b1_ref, w2_ref, b2_ref, o_ref, g_ref,
                 *, hidden, q_per_block, mxu_dtype):
    # x_ref:   [bm, H]      input rows (streamed)
    # wgt_ref: [bm, bn]     attention-weight rows (streamed, never upcast)
    # w1/w2:   [H, H]       MLP weights, fully VMEM-resident (single-buffered)
    # b1/b2:   [1, H]       MLP biases, VMEM-resident
    # o_ref:   [bm, bn]     output rows
    # g_ref:   [bm, H] f32  gate scratch, reused across lane blocks
    lane_blk = pl.program_id(1)

    @pl.when(lane_blk == 0)
    def _compute_gate():
        x = x_ref[...].astype(mxu_dtype)
        h = jnp.dot(x, w1_ref[...].astype(mxu_dtype),
                    preferred_element_type=jnp.float32)
        h = h + b1_ref[...].astype(jnp.float32)
        h = h * jax.nn.sigmoid(h)                       # SiLU (VPU/EUP), f32
        g = jnp.dot(h.astype(mxu_dtype), w2_ref[...].astype(mxu_dtype),
                    preferred_element_type=jnp.float32)
        g_ref[...] = g + b2_ref[...].astype(jnp.float32)

    # Cast the gate down ONCE to the stream dtype; the gating multiply runs in the
    # stream's native dtype so no f32 copy of the [bm, bn] tile is materialized.
    g = g_ref[...].astype(o_ref.dtype)
    if hidden % 128 == 0:
        # Lane-aligned per-query slices -> lane-dense unmasked stores.
        for q in range(q_per_block):                    # static unrolled loop
            sl = pl.ds(q * hidden, hidden)
            o_ref[:, sl] = wgt_ref[:, sl] * g
    else:
        # H not a multiple of 128: a per-query slice would lower to masked partial
        # stores; do one full-width multiply+store instead.
        if q_per_block > 1:
            g = jnp.concatenate([g] * q_per_block, axis=-1)
        o_ref[...] = wgt_ref[...] * g


def universal_attention_gate(inputs, weights, w1, b1, w2, b2, *, num_queries,
                             mxu_dtype=None):
    """inputs: [B, S, H]; weights: [B, S, Q*H] -> returns [B, S, Q*H]."""
    B, S, H = inputs.shape
    QH = weights.shape[-1]
    assert QH == num_queries * H
    M = B * S

    x2d = inputs.reshape(M, H)          # free (contiguous)
    w2d = weights.reshape(M, QH)        # free (contiguous)

    itemsize = jnp.dtype(weights.dtype).itemsize
    p_itemsize = jnp.dtype(w1.dtype).itemsize

    # MXU operand dtype: bf16 whenever the stream is half precision, or when H is
    # large enough that f32 matmul passes would matter.  Small-H f32 keeps f32.
    if mxu_dtype is None:
        if jnp.dtype(inputs.dtype) in (jnp.dtype(jnp.bfloat16), jnp.dtype(jnp.float16)):
            mxu_dtype = jnp.bfloat16
        elif H >= 512:
            mxu_dtype = jnp.bfloat16
        else:
            mxu_dtype = inputs.dtype

    # --- adaptive row tile: ~2 MiB streamed bytes per grid step -----------------
    stream_row_bytes = (H + 2 * QH) * itemsize            # x in + wgt in + out
    target_step_bytes = 2 * 1024 * 1024
    if M <= 8:
        bm = M
    else:
        bm = max(8, _round_up(target_step_bytes // max(stream_row_bytes, 1), 8))
        bm = min(bm, 1024)
        bm = min(bm, _round_up(M, 8))
        # Keep >= 2 row blocks so v7x's two TensorCores both get work.
        if _cdiv(M, bm) < 2:
            bm = max(8, _round_up(_cdiv(M, 2), 8))
    n_row = _cdiv(M, bm)

    # --- lane tiling for very large Q*H (keeps tiles inside v7x's 64 MiB) -------
    lane_budget = 4 * 1024 * 1024                          # per streamed buffer/step
    if H % 128 == 0 and bm * QH * itemsize > lane_budget:
        q_per_block = max(1, lane_budget // (bm * H * itemsize))
        q_per_block = min(q_per_block, num_queries)
        bn = q_per_block * H
    else:
        q_per_block = num_queries
        bn = QH
    n_lane = _cdiv(QH, bn)

    # --- VMEM budget: size the limit to actual need + headroom ------------------
    stream_bytes = 2 * bm * (H + 2 * bn) * itemsize        # double-buffered streams
    resident_bytes = 2 * H * H * p_itemsize + 2 * 8 * _round_up(H, 128) * p_itemsize
    scratch_bytes = bm * H * 4
    need = stream_bytes + resident_bytes + scratch_bytes
    try:
        phys_vmem = int(getattr(pltpu.get_tpu_info(), "vmem_capacity_bytes",
                                64 * 1024 * 1024))
    except Exception:
        phys_vmem = 64 * 1024 * 1024
    vmem_limit = min(max(int(need * 1.5) + (8 << 20), 32 << 20), phys_vmem * 3 // 4)

    kernel = functools.partial(_gate_kernel, hidden=H, q_per_block=q_per_block,
                               mxu_dtype=mxu_dtype)

    out2d = pl.pallas_call(
        kernel,
        out_shape=jax.ShapeDtypeStruct((M, QH), weights.dtype),
        grid_spec=pltpu.PrefetchScalarGridSpec(
            num_scalar_prefetch=0,
            grid=(n_row, n_lane),
            in_specs=[
                # Streamed rows; block index constant across the lane axis so Pallas
                # only re-fetches x when the row block changes.
                pl.BlockSpec((bm, H), lambda i, j: (i, 0)),
                pl.BlockSpec((bm, bn), lambda i, j: (i, j)),
                # MLP params: whole array resident in VMEM, single-buffered.
                pl.BlockSpec(memory_space=pltpu.MemorySpace.VMEM),   # W1
                pl.BlockSpec(memory_space=pltpu.MemorySpace.VMEM),   # b1
                pl.BlockSpec(memory_space=pltpu.MemorySpace.VMEM),   # W2
                pl.BlockSpec(memory_space=pltpu.MemorySpace.VMEM),   # b2
            ],
            out_specs=pl.BlockSpec((bm, bn), lambda i, j: (i, j)),
            scratch_shapes=[pltpu.VMEM((bm, H), jnp.float32)],       # gate scratch
        ),
        compiler_params=pltpu.CompilerParams(
            dimension_semantics=("parallel", "arbitrary"),
            vmem_limit_bytes=int(vmem_limit),
        ),
    )(x2d, w2d, w1, b1, w2, b2)

    return out2d.reshape(B, S, QH)


def _reference(inputs, weights, w1, b1, w2, b2, *, num_queries):
    """Pure-JAX reference mirroring the PyTorch forward (f32 math)."""
    B, S, H = inputs.shape
    h = jnp.dot(inputs.astype(jnp.float32), w1.astype(jnp.float32)) + b1[0].astype(jnp.float32)
    h = h * jax.nn.sigmoid(h)
    gates = jnp.dot(h, w2.astype(jnp.float32)) + b2[0].astype(jnp.float32)     # [B, S, H]
    w = weights.reshape(B, S, num_queries, H).astype(jnp.float32)              # (q, h) order
    gated = gates[:, :, None, :] * w                                           # broadcast over Q
    return gated.reshape(B, S, num_queries * H).astype(weights.dtype)


if __name__ == "__main__":
    base_key = jax.random.PRNGKey(0)

    def run_case(case_id, B, S, H, Q, dtype, atol, rtol):
        key = jax.random.fold_in(base_key, case_id)
        k_in, k_wt, k_w1, k_b1, k_w2, k_b2 = jax.random.split(key, 6)
        inputs = jax.random.normal(k_in, (B, S, H), dtype=jnp.float32).astype(dtype)
        weights = jax.random.normal(k_wt, (B, S, Q * H), dtype=jnp.float32).astype(dtype)
        scale = 1.0 / (H ** 0.5)
        w1 = jax.random.uniform(k_w1, (H, H), jnp.float32, -scale, scale)
        b1 = jax.random.uniform(k_b1, (1, H), jnp.float32, -scale, scale)
        w2 = jax.random.uniform(k_w2, (H, H), jnp.float32, -scale, scale)
        b2 = jax.random.uniform(k_b2, (1, H), jnp.float32, -scale, scale)

        out = universal_attention_gate(inputs, weights, w1, b1, w2, b2, num_queries=Q)
        out = jax.block_until_ready(out)
        ref = _reference(inputs, weights, w1, b1, w2, b2, num_queries=Q)

        assert out.shape == (B, S, Q * H)
        ok = jnp.allclose(out.astype(jnp.float32), ref.astype(jnp.float32),
                          atol=atol, rtol=rtol)
        assert ok, f"mismatch vs pure-JAX reference in case {case_id}"

    # Small f32 case (H=32 exercises the unaligned-lane full-width store path).
    run_case(0, B=2, S=8, H=32, Q=2, dtype=jnp.float32, atol=1e-5, rtol=1e-5)
    # Ragged rows (M=14 not a multiple of the 8-row tile) — no host pad/slice needed.
    run_case(1, B=2, S=7, H=32, Q=3, dtype=jnp.float32, atol=1e-5, rtol=1e-5)
    # bf16 stream with lane-aligned H (per-query lane-dense stores, bf16 MXU feed).
    run_case(2, B=2, S=8, H=128, Q=2, dtype=jnp.bfloat16, atol=1e-1, rtol=5e-2)

    print("KERNEL_OK")
</pallas_src>

<mosaic_0001>
module attributes {stable_mosaic.version = 11 : i64} {
  func.func @_gate_kernel(%arg0: i32, %arg1: i32, %arg2: memref<8x32xf32, #tpu.memory_space<vmem>>, %arg3: memref<8x64xf32, #tpu.memory_space<vmem>>, %arg4: memref<32x32xf32, #tpu.memory_space<vmem>>, %arg5: memref<1x32xf32, #tpu.memory_space<vmem>>, %arg6: memref<32x32xf32, #tpu.memory_space<vmem>>, %arg7: memref<1x32xf32, #tpu.memory_space<vmem>>, %arg8: memref<8x64xf32, #tpu.memory_space<vmem>>, %arg9: memref<8x32xf32, #tpu.memory_space<vmem>>) attributes {dimension_semantics = [#tpu.dimension_semantics<parallel>, #tpu.dimension_semantics<arbitrary>], iteration_bounds = array<i64: 2, 1>, scalar_prefetch = 0 : i64, scratch_operands = 1 : i64, tpu.core_type = #tpu.core_type<tc>, window_params = [{transform_indices = @transform_0, window_bounds = array<i64: 8, 32>}, {transform_indices = @transform_1, window_bounds = array<i64: 8, 64>}, {pipeline_mode = #tpu.pipeline_mode<synchronous>, transform_indices = @transform_2, window_bounds = array<i64: 32, 32>}, {pipeline_mode = #tpu.pipeline_mode<synchronous>, transform_indices = @transform_3, window_bounds = array<i64: 1, 32>}, {pipeline_mode = #tpu.pipeline_mode<synchronous>, transform_indices = @transform_4, window_bounds = array<i64: 32, 32>}, {pipeline_mode = #tpu.pipeline_mode<synchronous>, transform_indices = @transform_5, window_bounds = array<i64: 1, 32>}, {transform_indices = @transform_6, window_bounds = array<i64: 8, 64>}]} {
    %c0_i32 = arith.constant 0 : i32
    %0 = arith.cmpi eq, %arg1, %c0_i32 : i32
    %1 = arith.extui %0 : i1 to i32
    %c0_i32_0 = arith.constant 0 : i32
    %2 = arith.cmpi ne, %1, %c0_i32_0 : i32
    scf.if %2 {
      %c0_6 = arith.constant 0 : index
      %c0_7 = arith.constant 0 : index
      %8 = vector.load %arg2[%c0_6, %c0_7] : memref<8x32xf32, #tpu.memory_space<vmem>>, vector<8x32xf32>
      %c0_8 = arith.constant 0 : index
      %c0_9 = arith.constant 0 : index
      %9 = vector.load %arg4[%c0_8, %c0_9] : memref<32x32xf32, #tpu.memory_space<vmem>>, vector<32x32xf32>
      %cst = arith.constant dense<0.000000e+00> : vector<8x32xf32>
      %10 = tpu.matmul %8, %9, %cst {dimension_numbers = #tpu.dot_dimension_numbers<[1], [0], [0], [1], [0, 0, 1, 1], [], []>} : vector<8x32xf32>, vector<32x32xf32>, vector<8x32xf32> -> vector<8x32xf32>
      %c0_10 = arith.constant 0 : index
      %c0_11 = arith.constant 0 : index
      %11 = vector.load %arg5[%c0_10, %c0_11] : memref<1x32xf32, #tpu.memory_space<vmem>>, vector<1x32xf32>
      %12 = vector.broadcast %11 : vector<1x32xf32> to vector<8x32xf32>
      %13 = arith.addf %10, %12 : vector<8x32xf32>
      %14 = arith.negf %13 : vector<8x32xf32>
      %15 = math.exp %14 : vector<8x32xf32>
      %cst_12 = arith.constant 1.000000e+00 : f32
      %16 = vector.broadcast %cst_12 : f32 to vector<8x32xf32>
      %17 = arith.addf %16, %15 : vector<8x32xf32>
      %18 = arith.divf %16, %17 : vector<8x32xf32>
      %19 = arith.mulf %13, %18 : vector<8x32xf32>
      %c0_13 = arith.constant 0 : index
      %c0_14 = arith.constant 0 : index
      %20 = vector.load %arg6[%c0_13, %c0_14] : memref<32x32xf32, #tpu.memory_space<vmem>>, vector<32x32xf32>
      %cst_15 = arith.constant dense<0.000000e+00> : vector<8x32xf32>
      %21 = tpu.matmul %19, %20, %cst_15 {dimension_numbers = #tpu.dot_dimension_numbers<[1], [0], [0], [1], [0, 0, 1, 1], [], []>} : vector<8x32xf32>, vector<32x32xf32>, vector<8x32xf32> -> vector<8x32xf32>
      %c0_16 = arith.constant 0 : index
      %c0_17 = arith.constant 0 : index
      %22 = vector.load %arg7[%c0_16, %c0_17] : memref<1x32xf32, #tpu.memory_space<vmem>>, vector<1x32xf32>
      %23 = vector.broadcast %22 : vector<1x32xf32> to vector<8x32xf32>
      %24 = arith.addf %21, %23 : vector<8x32xf32>
      %c0_18 = arith.constant 0 : index
      %c0_19 = arith.constant 0 : index
      %25 = vector.load %arg9[%c0_18, %c0_19] : memref<8x32xf32, #tpu.memory_space<vmem>>, vector<8x32xf32>
      tpu.vector_store %arg9[%c0_18, %c0_19], %24 {strides = array<i32>} : memref<8x32xf32, #tpu.memory_space<vmem>>, vector<8x32xf32>,
    } else {
    }
    %c0 = arith.constant 0 : index
    %c0_1 = arith.constant 0 : index
    %3 = vector.load %arg9[%c0, %c0_1] : memref<8x32xf32, #tpu.memory_space<vmem>>, vector<8x32xf32>
    %4 = tpu.concatenate %3, %3 in 1 : vector<8x32xf32>, vector<8x32xf32> -> vector<8x64xf32>
    %c0_2 = arith.constant 0 : index
    %c0_3 = arith.constant 0 : index
    %5 = vector.load %arg3[%c0_2, %c0_3] : memref<8x64xf32, #tpu.memory_space<vmem>>, vector<8x64xf32>
    %6 = arith.mulf %5, %4 : vector<8x64xf32>
    %c0_4 = arith.constant 0 : index
    %c0_5 = arith.constant 0 : index
    %7 = vector.load %arg8[%c0_4, %c0_5] : memref<8x64xf32, #tpu.memory_space<vmem>>, vector<8x64xf32>
    tpu.vector_store %arg8[%c0_4, %c0_5], %6 {strides = array<i32>} : memref<8x64xf32, #tpu.memory_space<vmem>>, vector<8x64xf32>,
    return
  }
  func.func @transform_0(%arg0: i32, %arg1: i32) -> (i32, i32) {
    %c0_i32 = arith.constant 0 : i32
    %c0_i32_0 = arith.constant 0 : i32
    return %arg0, %c0_i32 : i32, i32
  }
  func.func @transform_1(%arg0: i32, %arg1: i32) -> (i32, i32) {
    %c0_i32 = arith.constant 0 : i32
    return %arg0, %arg1 : i32, i32
  }
  func.func @transform_2(%arg0: i32, %arg1: i32) -> (i32, i32) {
    %c0_i32 = arith.constant 0 : i32
    %c0_i32_0 = arith.constant 0 : i32
    %c0_i32_1 = arith.constant 0 : i32
    return %c0_i32, %c0_i32_0 : i32, i32
  }
  func.func @transform_3(%arg0: i32, %arg1: i32) -> (i32, i32) {
    %c0_i32 = arith.constant 0 : i32
    %c0_i32_0 = arith.constant 0 : i32
    %c0_i32_1 = arith.constant 0 : i32
    return %c0_i32, %c0_i32_0 : i32, i32
  }
  func.func @transform_4(%arg0: i32, %arg1: i32) -> (i32, i32) {
    %c0_i32 = arith.constant 0 : i32
    %c0_i32_0 = arith.constant 0 : i32
    %c0_i32_1 = arith.constant 0 : i32
    return %c0_i32, %c0_i32_0 : i32, i32
  }
  func.func @transform_5(%arg0: i32, %arg1: i32) -> (i32, i32) {
    %c0_i32 = arith.constant 0 : i32
    %c0_i32_0 = arith.constant 0 : i32
    %c0_i32_1 = arith.constant 0 : i32
    return %c0_i32, %c0_i32_0 : i32, i32
  }
  func.func @transform_6(%arg0: i32, %arg1: i32) -> (i32, i32) {
    %c0_i32 = arith.constant 0 : i32
    return %arg0, %arg1 : i32, i32
  }
}

</mosaic_0001>

<llo_original>
// kernel: tpu_custom_call.1
$region0: #{tpu_custom_call.1}
  #allocation0 [shape = 'u32[]', space=smem, size = 0x4, offset = 0x4, fixed_abs, tag = 'smem constant byte address 0x4 - core index']
  #allocation1 [shape = 'u32[72,128]{1,0:T(1,128)}', space=vmem, size = 0x9000, scoped, tag = 'internal scratch']
  #allocation2 [shape = 'f32[8,32]{1,0:T(8,128)}', space=vmem, size = 0x1000, scoped, tag = 'scratch operand']
  %s0 = inlined_call_operand.hbm [shape: f32[16,32], index: 0, kind: input, shape index: {}]
  %s1 = inlined_call_operand.hbm [shape: f32[16,64], index: 1, kind: input, shape index: {}]
  %s2 = inlined_call_operand.hbm [shape: f32[32,32], index: 2, kind: input, shape index: {}]
  %s3 = inlined_call_operand.vmem [shape: f32[1,32], index: 3, kind: input, shape index: {}]
  %s4 = inlined_call_operand.hbm [shape: f32[32,32], index: 4, kind: input, shape index: {}]
  %s5 = inlined_call_operand.vmem [shape: f32[1,32], index: 5, kind: input, shape index: {}]
  %s6 = inlined_call_operand.hbm [shape: f32[16,64], index: 6, kind: output, shape index: {}]
  %s7 = sld [smem:[#allocation0]]
  $region77: #{tpu_custom_call.1} parent=0
    _
  %s9 = ssub.s32 1, %s7
  %s10 = scalar_select 0, %s9, %s7
  $region1: #{tpu_custom_call.1} parent=0
    #allocation3 [shape = 'u8[8192]{0}', space=vmem, size = 0x2000, scoped, tag = 'input window, operand 0']
    #allocation4 [shape = 's32[2]{0}', space=sflag, size = 0x8, scoped, tag = 'scoped memory for tpu_custom_call.1']
    #allocation5 [shape = 's32[2]{0}', space=sflag, size = 0x8, scoped, tag = 'scoped memory for tpu_custom_call.1']
    #allocation6 [shape = 'u8[8192]{0}', space=vmem, size = 0x2000, scoped, tag = 'input window, operand 1']
    #allocation7 [shape = 's32[2]{0}', space=sflag, size = 0x8, scoped, tag = 'scoped memory for tpu_custom_call.1']
    #allocation8 [shape = 'u8[16384]{0}', space=vmem, size = 0x4000, scoped, tag = 'input window, operand 2, single buffered']
    #allocation9 [shape = 'u8[16384]{0}', space=vmem, size = 0x4000, scoped, tag = 'input window, operand 4, single buffered']
    #allocation10 [shape = 's32[1]{0}', space=sflag, size = 0x4, scoped, tag = 'scoped memory for tpu_custom_call.1']
    #allocation11 [shape = 'u8[8192]{0}', space=vmem, size = 0x2000, scoped, tag = 'output window, operand 0']
    %11 = vsyncpa [#allocation4], 0
    %s12 = scalar_lea.sflag [#allocation4], 1
    %13 = vsyncpa %s12, 0
    %14 = vsyncpa [#allocation7], 0
    %s15 = scalar_lea.sflag [#allocation7], 1
    %16 = vsyncpa %s15, 0
    %17 = vsyncpa [#allocation10], 0
    %18 = vsyncpa [#allocation5], 0
    %s19 = scalar_lea.sflag [#allocation5], 1
    %20 = vsyncpa %s19, 0
    loop: start=0, step=1, limit=4
    $region2: #{tpu_custom_call.1} parent=1 // loop_pre_header
      _
    $region3: #{tpu_custom_call.1} parent=1 // loop_header
      %s22 = sphi 0, %s26
      %p23 = scmp.ge.s32.totalorder %s22, 4
      %s29 = sphi 0, %s41
      %s30 = sphi 0, %s37
      %s31 = sphi 0, %s29
      %s32 = sphi 0, %s30
      %s33 = sphi 0, %s31
      %s34 = sphi 0, %s32
      %s44 = sphi 0, %s46
      %s47 = sphi 0, %s44
      %s48 = sphi 0, %s47
      %s64 = sphi 0, %s48
      %s72 = sphi 0, %s74
      %s75 = sphi 0, %s72
      %s76 = sphi 0, %s75
      %s92 = sphi 0, %s76
      %s96 = sphi 0, %s96
      %s98 = sphi 0, %s96
      %s99 = sphi 0, %s98
      %s113 = sphi 0, %s99
      %s117 = sphi 0, %s117
      %s119 = sphi 0, %s117
      %s120 = sphi 0, %s119
      %s134 = sphi 0, %s120
      %s138 = sphi 0, %s138
      %s140 = sphi 0, %s138
      %s141 = sphi 0, %s140
      %s155 = sphi 0, %s141
      %s159 = sphi 0, %s159
      %s161 = sphi 0, %s159
      %s162 = sphi 0, %s161
      %s176 = sphi 0, %s162
      %s184 = sphi 0, %s186
      %s187 = sphi 0, %s184
      %s188 = sphi 0, %s187
      %s204 = sphi 0, %s188
    $region4: #{tpu_custom_call.1} parent=1 // loop_header_branch
      %25 = sbr.rel (%p23) target = $region8
    $region5: #{tpu_custom_call.1} parent=1 // loop_body
      %s27 = ssub.s32 %s22, 1
      %s28 = ssub.s32 %s22, 2
      %s35 = sadd.s32 1, %s30
      %p36 = scmp.ge.s32.totalorder %s35, 1
      %s37 = scalar_select %p36, 0, %s35
      %s38 = sadd.s32 1, %s29
      %s39 = scalar_select %p36, %s38, %s29
      %p40 = scmp.ge.s32.totalorder %s39, 2
      %s41 = scalar_select %p40, 0, %s39
      %s42 = ssub.s32 %s29, %s41
      %p43 = scmp.eq.s32.totalorder %s42, 0
      %s45 = sadd.s32 %s44, 1
      %s46 = scalar_select %p43, %s44, %s45
      %p49 = pneg %p43
      %p50 = scmp.eq.s32.totalorder %s22, 1
      %p51 = por %p49, %p50
      %p52 = scmp.ne.s32.totalorder %s44, %s47
      %p53 = scmp.eq.s32.totalorder %s22, 0
      %p54 = por %p52, %p53
      %p55 = scmp.ne.s32.totalorder %s44, %s47
      %p56 = scmp.eq.s32.totalorder %s27, 1
      %p57 = por %p55, %p56
      %p58 = scmp.ne.s32.totalorder %s47, %s48
      %p59 = scmp.eq.s32.totalorder %s27, 0
      %p60 = por %p58, %p59
      %p61 = scmp.ne.s32.totalorder %s47, %s48
      %p62 = scmp.eq.s32.totalorder %s28, 1
      %p63 = por %p61, %p62
      %p65 = scmp.ne.s32.totalorder %s48, %s64
      %p66 = scmp.eq.s32.totalorder %s28, 0
      %p67 = por %p65, %p66
      %s68 = ssub.s32 %s29, %s41
      %s69 = ssub.s32 %s30, %s37
      %s70 = sor.u32 %s68, %s69
      %p71 = scmp.eq.s32.totalorder %s70, 0
      %s73 = sadd.s32 %s72, 1
      %s74 = scalar_select %p71, %s72, %s73
      %p77 = pneg %p71
      %p78 = scmp.eq.s32.totalorder %s22, 1
      %p79 = por %p77, %p78
      %p80 = scmp.ne.s32.totalorder %s72, %s75
      %p81 = scmp.eq.s32.totalorder %s22, 0
      %p82 = por %p80, %p81
      %p83 = scmp.ne.s32.totalorder %s72, %s75
      %p84 = scmp.eq.s32.totalorder %s27, 1
      %p85 = por %p83, %p84
      %p86 = scmp.ne.s32.totalorder %s75, %s76
      %p87 = scmp.eq.s32.totalorder %s27, 0
      %p88 = por %p86, %p87
      %p89 = scmp.ne.s32.totalorder %s75, %s76
      %p90 = scmp.eq.s32.totalorder %s28, 1
      %p91 = por %p89, %p90
      %p93 = scmp.ne.s32.totalorder %s76, %s92
      %p94 = scmp.eq.s32.totalorder %s28, 0
      %p95 = por %p93, %p94
      %s97 = sadd.s32 %s96, 1
      %p100 = scmp.eq.s32.totalorder %s22, 1
      %p101 = scmp.ne.s32.totalorder %s96, %s98
      %p102 = scmp.eq.s32.totalorder %s22, 0
      %p103 = por %p101, %p102
      %p104 = scmp.ne.s32.totalorder %s96, %s98
      %p105 = scmp.eq.s32.totalorder %s27, 1
      %p106 = por %p104, %p105
      %p107 = scmp.ne.s32.totalorder %s98, %s99
      %p108 = scmp.eq.s32.totalorder %s27, 0
      %p109 = por %p107, %p108
      %p110 = scmp.ne.s32.totalorder %s98, %s99
      %p111 = scmp.eq.s32.totalorder %s28, 1
      %p112 = por %p110, %p111
      %p114 = scmp.ne.s32.totalorder %s99, %s113
      %p115 = scmp.eq.s32.totalorder %s28, 0
      %p116 = por %p114, %p115
      %s118 = sadd.s32 %s117, 1
      %p121 = scmp.eq.s32.totalorder %s22, 1
      %p122 = scmp.ne.s32.totalorder %s117, %s119
      %p123 = scmp.eq.s32.totalorder %s22, 0
      %p124 = por %p122, %p123
      %p125 = scmp.ne.s32.totalorder %s117, %s119
      %p126 = scmp.eq.s32.totalorder %s27, 1
      %p127 = por %p125, %p126
      %p128 = scmp.ne.s32.totalorder %s119, %s120
      %p129 = scmp.eq.s32.totalorder %s27, 0
      %p130 = por %p128, %p129
      %p131 = scmp.ne.s32.totalorder %s119, %s120
      %p132 = scmp.eq.s32.totalorder %s28, 1
      %p133 = por %p131, %p132
      %p135 = scmp.ne.s32.totalorder %s120, %s134
      %p136 = scmp.eq.s32.totalorder %s28, 0
      %p137 = por %p135, %p136
      %s139 = sadd.s32 %s138, 1
      %p142 = scmp.eq.s32.totalorder %s22, 1
      %p143 = scmp.ne.s32.totalorder %s138, %s140
      %p144 = scmp.eq.s32.totalorder %s22, 0
      %p145 = por %p143, %p144
      %p146 = scmp.ne.s32.totalorder %s138, %s140
      %p147 = scmp.eq.s32.totalorder %s27, 1
      %p148 = por %p146, %p147
      %p149 = scmp.ne.s32.totalorder %s140, %s141
      %p150 = scmp.eq.s32.totalorder %s27, 0
      %p151 = por %p149, %p150
      %p152 = scmp.ne.s32.totalorder %s140, %s141
      %p153 = scmp.eq.s32.totalorder %s28, 1
      %p154 = por %p152, %p153
      %p156 = scmp.ne.s32.totalorder %s141, %s155
      %p157 = scmp.eq.s32.totalorder %s28, 0
      %p158 = por %p156, %p157
      %s160 = sadd.s32 %s159, 1
      %p163 = scmp.eq.s32.totalorder %s22, 1
      %p164 = scmp.ne.s32.totalorder %s159, %s161
      %p165 = scmp.eq.s32.totalorder %s22, 0
      %p166 = por %p164, %p165
      %p167 = scmp.ne.s32.totalorder %s159, %s161
      %p168 = scmp.eq.s32.totalorder %s27, 1
      %p169 = por %p167, %p168
      %p170 = scmp.ne.s32.totalorder %s161, %s162
      %p171 = scmp.eq.s32.totalorder %s27, 0
      %p172 = por %p170, %p171
      %p173 = scmp.ne.s32.totalorder %s161, %s162
      %p174 = scmp.eq.s32.totalorder %s28, 1
      %p175 = por %p173, %p174
      %p177 = scmp.ne.s32.totalorder %s162, %s176
      %p178 = scmp.eq.s32.totalorder %s28, 0
      %p179 = por %p177, %p178
      %s180 = ssub.s32 %s29, %s41
      %s181 = ssub.s32 %s30, %s37
      %s182 = sor.u32 %s180, %s181
      %p183 = scmp.eq.s32.totalorder %s182, 0
      %s185 = sadd.s32 %s184, 1
      %s186 = scalar_select %p183, %s184, %s185
      %p189 = pneg %p183
      %p190 = scmp.eq.s32.totalorder %s22, 1
      %p191 = por %p189, %p190
      %p192 = scmp.ne.s32.totalorder %s184, %s187
      %p193 = scmp.eq.s32.totalorder %s22, 0
      %p194 = por %p192, %p193
      %p195 = scmp.ne.s32.totalorder %s184, %s187
      %p196 = scmp.eq.s32.totalorder %s27, 1
      %p197 = por %p195, %p196
      %p198 = scmp.ne.s32.totalorder %s187, %s188
      %p199 = scmp.eq.s32.totalorder %s27, 0
      %p200 = por %p198, %p199
      %p201 = scmp.ne.s32.totalorder %s187, %s188
      %p202 = scmp.eq.s32.totalorder %s28, 1
      %p203 = por %p201, %p202
      %p205 = scmp.ne.s32.totalorder %s188, %s204
      %p206 = scmp.eq.s32.totalorder %s28, 0
      %p207 = por %p205, %p206
      %p208 = scmp.le.s32.totalorder 1, %s22
      %p209 = scmp.lt.s32.totalorder %s22, 3
      %p210 = pnand %p208, %p209
      %p211 = pneg %p210
      // Predicated region
      $region9: #{tpu_custom_call.1} parent=5 // pred_check
        _
      $region10: #{tpu_custom_call.1} parent=5 // pred_check_branch
        %213 = sbr.rel (%p210) target = $region12
      $region11: #{tpu_custom_call.1} parent=5 // pred_region
        %s214 = ssub.s32 %s22, 1
        // Predicated region
        $region13: #{tpu_custom_call.1} parent=11 // pred_check
          %p215 = pneg %p109
        $region14: #{tpu_custom_call.1} parent=11 // pred_check_branch
          %217 = sbr.rel (%p215) target = $region16
        $region15: #{tpu_custom_call.1} parent=11 // pred_region
          %219 = vsyncadd [#allocation7], 0
          %s220 = sshll.u32 %s2, 4
          %s221 = int_to_ptr.hbm [resolvable:$true] %s220
          %s222 = sshll.u32 [#allocation8], 4
          %s223 = int_to_ptr.vmem [resolvable:$true] %s222
          %228 = dma.hbm_to_vmem [thread:$0]  %s221, 512, %s223, [#allocation7], 128, 128, 8
        $region16: #{tpu_custom_call.1} parent=11 // pred_fallthru
          _
        // Predicated region
        $region17: #{tpu_custom_call.1} parent=11 // pred_check
          %p229 = pneg %p130
        $region18: #{tpu_custom_call.1} parent=11 // pred_check_branch
          %231 = sbr.rel (%p229) target = $region20
        $region19: #{tpu_custom_call.1} parent=11 // pred_region
          _
        $region20: #{tpu_custom_call.1} parent=11 // pred_fallthru
          _
        // Predicated region
        $region21: #{tpu_custom_call.1} parent=11 // pred_check
          %p232 = pneg %p151
        $region22: #{tpu_custom_call.1} parent=11 // pred_check_branch
          %234 = sbr.rel (%p232) target = $region24
        $region23: #{tpu_custom_call.1} parent=11 // pred_region
          %236 = vsyncadd [#allocation10], 0
          %s237 = sshll.u32 %s4, 4
          %s238 = int_to_ptr.hbm [resolvable:$true] %s237
          %s239 = sshll.u32 [#allocation9], 4
          %s240 = int_to_ptr.vmem [resolvable:$true] %s239
          %245 = dma.hbm_to_vmem [thread:$0]  %s238, 512, %s240, [#allocation10], 128, 128, 8
        $region24: #{tpu_custom_call.1} parent=11 // pred_fallthru
          _
        // Predicated region
        $region25: #{tpu_custom_call.1} parent=11 // pred_check
          %p246 = pneg %p172
        $region26: #{tpu_custom_call.1} parent=11 // pred_check_branch
          %248 = sbr.rel (%p246) target = $region28
        $region27: #{tpu_custom_call.1} parent=11 // pred_region
          _
        $region28: #{tpu_custom_call.1} parent=11 // pred_fallthru
          _
      $region12: #{tpu_custom_call.1} parent=5 // pred_fallthru
        _
      %p249 = scmp.lt.s32.totalorder %s22, 2
      // Predicated region
      $region29: #{tpu_custom_call.1} parent=5 // pred_check
        %p250 = pneg %p249
      $region30: #{tpu_custom_call.1} parent=5 // pred_check_branch
        %252 = sbr.rel (%p250) target = $region32
      $region31: #{tpu_custom_call.1} parent=5 // pred_region
        // Predicated region
        $region33: #{tpu_custom_call.1} parent=31 // pred_check
          %p253 = pneg %p54
        $region34: #{tpu_custom_call.1} parent=31 // pred_check_branch
          %255 = sbr.rel (%p253) target = $region36
        $region35: #{tpu_custom_call.1} parent=31 // pred_region
          %s256 = sand.u32 %s44, 1
          %s257 = scalar_lea.sflag [#allocation4], %s256
          %s258 = sand.u32 %s44, 1
          %s259 = smul.addr %s258, 8
          %s260 = scalar_lea.vmem [#allocation3], %s259
          %262 = vsyncadd %s257, 0
          %s263 = smul.addr %s29, 8
          %s264 = scalar_lea.hbm %s0, %s263
          %s266 = sshll.u32 %s264, 4
          %s267 = int_to_ptr.hbm [resolvable:$true] %s266
          %s268 = sshll.u32 %s260, 4
          %s269 = int_to_ptr.vmem [resolvable:$true] %s268
          %271 = dma.hbm_to_vmem [thread:$0]  %s267, 128, %s269, %s257
        $region36: #{tpu_custom_call.1} parent=31 // pred_fallthru
          _
        // Predicated region
        $region37: #{tpu_custom_call.1} parent=31 // pred_check
          %p272 = pneg %p82
        $region38: #{tpu_custom_call.1} parent=31 // pred_check_branch
          %274 = sbr.rel (%p272) target = $region40
        $region39: #{tpu_custom_call.1} parent=31 // pred_region
          %s275 = sand.u32 %s22, 1
          %s276 = scalar_lea.sflag [#allocation7], %s275
          %s277 = sand.u32 %s72, 1
          %s278 = smul.addr %s277, 8
          %s279 = scalar_lea.vmem [#allocation6], %s278
          %281 = vsyncadd %s276, 0
          %s282 = sadd.s32 %s30, %s29
          %s283 = smul.addr %s282, 8
          %s284 = scalar_lea.hbm %s1, %s283
          %s286 = sshll.u32 %s284, 4
          %s287 = int_to_ptr.hbm [resolvable:$true] %s286
          %s288 = sshll.u32 %s279, 4
          %s289 = int_to_ptr.vmem [resolvable:$true] %s288
          %291 = dma.hbm_to_vmem [thread:$0]  %s287, 128, %s289, %s276
        $region40: #{tpu_custom_call.1} parent=31 // pred_fallthru
          _
      $region32: #{tpu_custom_call.1} parent=5 // pred_fallthru
        _
      %p292 = scmp.le.s32.totalorder 1, %s22
      %p293 = scmp.lt.s32.totalorder %s22, 3
      %p294 = pnand %p292, %p293
      %p295 = pneg %p294
      // Predicated region
      $region41: #{tpu_custom_call.1} parent=5 // pred_check
        _
      $region42: #{tpu_custom_call.1} parent=5 // pred_check_branch
        %297 = sbr.rel (%p294) target = $region44
      $region43: #{tpu_custom_call.1} parent=5 // pred_region
        %s298 = ssub.s32 %s22, 1
        %s299 = sand.u32 %s47, 1
        %s300 = scalar_lea.sflag [#allocation4], %s299
        %s301 = sand.u32 %s47, 1
        %s302 = smul.addr %s301, 8
        %s303 = scalar_lea.vmem [#allocation3], %s302
        // Predicated region
        $region45: #{tpu_custom_call.1} parent=43 // pred_check
          %p304 = pneg %p60
        $region46: #{tpu_custom_call.1} parent=43 // pred_check_branch
          %306 = sbr.rel (%p304) target = $region48
        $region47: #{tpu_custom_call.1} parent=43 // pred_region
          %308 = dma.done %s300, 128
        $region48: #{tpu_custom_call.1} parent=43 // pred_fallthru
          _
        %s309 = sand.u32 %s27, 1
        %s310 = scalar_lea.sflag [#allocation7], %s309
        %s311 = sand.u32 %s75, 1
        %s312 = smul.addr %s311, 8
        %s313 = scalar_lea.vmem [#allocation6], %s312
        // Predicated region
        $region49: #{tpu_custom_call.1} parent=43 // pred_check
          %p314 = pneg %p88
        $region50: #{tpu_custom_call.1} parent=43 // pred_check_branch
          %316 = sbr.rel (%p314) target = $region52
        $region51: #{tpu_custom_call.1} parent=43 // pred_region
          %318 = dma.done %s310, 128
        $region52: #{tpu_custom_call.1} parent=43 // pred_fallthru
          _
        // Predicated region
        $region53: #{tpu_custom_call.1} parent=43 // pred_check
          %p319 = pneg %p109
        $region54: #{tpu_custom_call.1} parent=43 // pred_check_branch
          %321 = sbr.rel (%p319) target = $region56
        $region55: #{tpu_custom_call.1} parent=43 // pred_region
          %323 = dma.done [#allocation7], 512
        $region56: #{tpu_custom_call.1} parent=43 // pred_fallthru
          _
        // Predicated region
        $region57: #{tpu_custom_call.1} parent=43 // pred_check
          %p324 = pneg %p151
        $region58: #{tpu_custom_call.1} parent=43 // pred_check_branch
          %326 = sbr.rel (%p324) target = $region60
        $region59: #{tpu_custom_call.1} parent=43 // pred_region
          %328 = dma.done [#allocation10], 512
        $region60: #{tpu_custom_call.1} parent=43 // pred_fallthru
          _
        %s329 = sand.u32 %s47, 1
        %s330 = scalar_lea.sflag [#allocation4], %s329
        %s331 = sand.u32 %s47, 1
        %s332 = smul.addr %s331, 8
        %s333 = scalar_lea.vmem [#allocation3], %s332
        %p334 = pneg %p60
        %p335 = pneg %p57
        %s336 = sand.u32 %s27, 1
        %s337 = scalar_lea.sflag [#allocation7], %s336
        %s338 = sand.u32 %s75, 1
        %s339 = smul.addr %s338, 8
        %s340 = scalar_lea.vmem [#allocation6], %s339
        %p341 = pneg %p88
        %p342 = pneg %p85
        %p343 = pneg %p109
        %p344 = pneg %p106
        %p345 = pneg %p130
        %p346 = pneg %p127
        %p347 = pneg %p151
        %p348 = pneg %p148
        %p349 = pneg %p172
        %p350 = pneg %p169
        %p351 = pneg %p200
        %p352 = pneg %p197
        %s353 = sand.u32 %s187, 1
        %s354 = scalar_lea.sflag [#allocation5], %s353
        %s355 = sand.u32 %s187, 1
        %s356 = smul.addr %s355, 8
        %s357 = scalar_lea.vmem [#allocation11], %s356
        %p358 = scmp.eq.s32.totalorder %s32, 0
        // Predicated region
        $region61: #{tpu_custom_call.1} parent=43 // pred_check
          %p359 = pneg %p358
        $region62: #{tpu_custom_call.1} parent=43 // pred_check_branch
          %361 = sbr.rel (%p359) target = $region64
        $region63: #{tpu_custom_call.1} parent=43 // pred_region
          %v362 = vld [vmem:[%s303] sm:$0xff]
          %v363 = vld [vmem:[#allocation8] sm:$0xff]
          %v364 = vld [vmem:[#allocation8 + $0x8] sm:$0xff]
          %v365 = vld [vmem:[#allocation8 + $0x10] sm:$0xff]
          %v366 = vld [vmem:[#allocation8 + $0x18] sm:$0xff]
          %v367 = vld [vmem:[%s3] sm:$0x1]
          %v369 = vperm.slane %v367, 0
          %vm371 = vcmask 261120
          %v373 = vsel %vm371, %v362, 0
          %375 = vmatpush.msra.mxu0 0.0
          %376 = vmatpush.msra.mxu0 0.0
          %377 = vmatpush.msra.mxu0 0.0
          %378 = vmatpush.msra.mxu0 0.0
          %379 = vmatpush.msra.mxu0 0.0
          %380 = vmatpush.msra.mxu0 0.0
          %381 = vmatpush.msra.mxu0 0.0
          %382 = vmatpush.msra.mxu0 0.0
          %383 = vmatpush.msra.mxu0 0.0
          %384 = vmatpush.msra.mxu0 0.0
          %385 = vmatpush.msra.mxu0 0.0
          %386 = vmatpush.msra.mxu0 0.0
          %387 = vmatpush.msra.mxu0 %v366
          %388 = vmatpush.msra.mxu0 %v365
          %389 = vmatpush.msra.mxu0 %v364
          %390 = vmatpush.msra.mxu0 %v363
          %391 = vmatmul.f32.gmra.mxu0 %v373
          %v392 = vpop.f32.mrf.mxu0
          %v393 = vadd.f32 %v369, %v392
          %394 = vdwg.mxu0
          %v395 = vxor.u32 %v393, 2147483648
          %v396 = vmul.f32 %v395, 1.442695
          %v397 = vpow.pop %v396
          %v398 = vadd.f32 %v397, 1.0
          %v399 = vrcp.pop %v398
          %v400 = vmul.f32 %v398, %v399
          %v401 = vsub.f32 1.0, %v400
          %v402 = vmul.f32 %v399, %v401
          %v403 = vadd.f32 %v399, %v402
          %vm404 = vweird.f32 %v398
          %vm405 = vweird.f32 %v399
          %vm406 = vmor %vm404, %vm405
          %v407 = vsel %vm406, %v399, %v403
          %v408 = vand.u32 2147483647, %v398
          %vm409 = vcmp.eq.f32.partialorder %v408, 8.507059e+37
          %v410 = vand.u32 %v398, 2147483648
          %v411 = vor.u32 1.1754944e-38, %v410
          %v412 = vsel %vm409, %v411, %v407
          %v413 = vmul.f32 1.0, %v412
          %v414 = vmul.f32 %v393, %v413
          %v415 = vld [vmem:[#allocation9] sm:$0xff]
          %v416 = vld [vmem:[#allocation9 + $0x8] sm:$0xff]
          %v417 = vld [vmem:[#allocation9 + $0x10] sm:$0xff]
          %v418 = vld [vmem:[#allocation9 + $0x18] sm:$0xff]
          %v419 = vld [vmem:[%s5] sm:$0x1]
          %v421 = vperm.slane %v419, 0
          %v424 = vsel %vm371, %v414, 0
          %426 = vmatpush.msra.mxu0 0.0
          %427 = vmatpush.msra.mxu0 0.0
          %428 = vmatpush.msra.mxu0 0.0
          %429 = vmatpush.msra.mxu0 0.0
          %430 = vmatpush.msra.mxu0 0.0
          %431 = vmatpush.msra.mxu0 0.0
          %432 = vmatpush.msra.mxu0 0.0
          %433 = vmatpush.msra.mxu0 0.0
          %434 = vmatpush.msra.mxu0 0.0
          %435 = vmatpush.msra.mxu0 0.0
          %436 = vmatpush.msra.mxu0 0.0
          %437 = vmatpush.msra.mxu0 0.0
          %438 = vmatpush.msra.mxu0 %v418
          %439 = vmatpush.msra.mxu0 %v417
          %440 = vmatpush.msra.mxu0 %v416
          %441 = vmatpush.msra.mxu0 %v415
          %442 = vmatmul.f32.gmra.mxu0 %v424
          %v443 = vpop.f32.mrf.mxu0
          %v444 = vadd.f32 %v421, %v443
          %445 = vdwg.mxu0
          %446 = vst.msk [vmem:[#allocation2] sm:$0xff] %vm371, %v444
        $region64: #{tpu_custom_call.1} parent=43 // pred_fallthru
          _
        %v447 = vld [vmem:[#allocation2] sm:$0xff]
        %449 = vrot.lane.b32.xlu0 %v447, 32
        %v450 = vpop.permute.xlu0 %449
        %vm452 = vcmask 261120
        %v453 = vsel %vm452, %v447, %v450
        %v454 = vld [vmem:[%s313] sm:$0xff]
        %v455 = vmul.f32 %v454, %v453
        %vm456 = vcmask 523264
        %457 = vst.msk [vmem:[%s357] sm:$0xff] %vm456, %v455
        %s458 = sand.u32 %s187, 1
        %s459 = scalar_lea.sflag [#allocation5], %s458
        %s460 = sand.u32 %s187, 1
        %s461 = smul.addr %s460, 8
        %s462 = scalar_lea.vmem [#allocation11], %s461
        // Predicated region
        $region65: #{tpu_custom_call.1} parent=43 // pred_check
          %p463 = pneg %p197
        $region66: #{tpu_custom_call.1} parent=43 // pred_check_branch
          %465 = sbr.rel (%p463) target = $region68
        $region67: #{tpu_custom_call.1} parent=43 // pred_region
          %467 = vsyncadd %s459, 0
          %s468 = sadd.s32 %s32, %s31
          %s469 = smul.addr %s468, 8
          %s470 = scalar_lea.hbm %s6, %s469
          %s472 = sshll.u32 %s462, 4
          %s473 = int_to_ptr.vmem [resolvable:$true] %s472
          %s474 = sshll.u32 %s470, 4
          %s475 = int_to_ptr.hbm [resolvable:$true] %s474
          %477 = dma.vmem_to_hbm [thread:$0]  %s473, 128, %s475, %s459
        $region68: #{tpu_custom_call.1} parent=43 // pred_fallthru
          _
      $region44: #{tpu_custom_call.1} parent=5 // pred_fallthru
        _
      %p478 = scmp.le.s32.totalorder 2, %s22
      // Predicated region
      $region69: #{tpu_custom_call.1} parent=5 // pred_check
        %p479 = pneg %p478
      $region70: #{tpu_custom_call.1} parent=5 // pred_check_branch
        %481 = sbr.rel (%p479) target = $region72
      $region71: #{tpu_custom_call.1} parent=5 // pred_region
        %s482 = ssub.s32 %s22, 2
        // Predicated region
        $region73: #{tpu_custom_call.1} parent=71 // pred_check
          %p483 = pneg %p203
        $region74: #{tpu_custom_call.1} parent=71 // pred_check_branch
          %485 = sbr.rel (%p483) target = $region76
        $region75: #{tpu_custom_call.1} parent=71 // pred_region
          %s486 = sand.u32 %s188, 1
          %s487 = scalar_lea.sflag [#allocation5], %s486
          %s488 = sand.u32 %s188, 1
          %s489 = smul.addr %s488, 8
          %s490 = scalar_lea.vmem [#allocation11], %s489
          %492 = dma.done %s487, 128
        $region76: #{tpu_custom_call.1} parent=71 // pred_fallthru
          _
      $region72: #{tpu_custom_call.1} parent=5 // pred_fallthru
        _
    $region6: #{tpu_custom_call.1} parent=1 // loop_footer
      %s26 = sadd.s32 1, %s22
    $region7: #{tpu_custom_call.1} parent=1 // loop_footer_branch
      %21 = sbr.rel target = $region3
    $region8: #{tpu_custom_call.1} parent=1 // loop_exit
      _
    %493 = vsyncpa [#allocation4], 1
    %s494 = scalar_lea.sflag [#allocation4], 1
    %495 = vsyncpa %s494, 1
    %496 = vsyncpa [#allocation7], 1
    %s497 = scalar_lea.sflag [#allocation7], 1
    %498 = vsyncpa %s497, 1
    %499 = vsyncpa [#allocation10], 1
    %500 = vsyncpa [#allocation5], 1
    %s501 = scalar_lea.sflag [#allocation5], 1
    %502 = vsyncpa %s501, 1

</llo_original>
